<compile_context>
chip_gen: v6e
topology: v6e:2x2x1
jax: 0.10.0
libtpu: 0.0.40
codegen_flags: <defaults>
</compile_context>

<pallas_src>
import functools

import jax
import jax.numpy as jnp
from jax.experimental import pallas as pl
from jax.experimental.pallas import tpu as pltpu

LANE = 128            # TPU lane width
OUT_DIM = 6           # logical output width of the probe head
HIDDEN = (256, 128, 64)


def mlp_kernel(x_ref, w1_ref, b1_ref, w2_ref, b2_ref, w3_ref, b3_ref,
               w4_ref, b4_ref, o_ref):
    """Entire MLP forward for one batch tile; all (padded) weights VMEM-resident."""
    cdt = w1_ref.dtype  # matmul operand dtype (bf16 fast path or f32)

    # In-kernel cast of the f32 x tile (no separate HBM pass in the wrapper).
    x = x_ref[...].astype(cdt)

    h = jnp.dot(x, w1_ref[...],
                preferred_element_type=jnp.float32) + b1_ref[...]
    h = jnp.maximum(h, 0.0)

    h = jnp.dot(h.astype(cdt), w2_ref[...],
                preferred_element_type=jnp.float32) + b2_ref[...]
    h = jnp.maximum(h, 0.0)

    h = jnp.dot(h.astype(cdt), w3_ref[...],
                preferred_element_type=jnp.float32) + b3_ref[...]
    h = jnp.maximum(h, 0.0)

    out = jnp.dot(h.astype(cdt), w4_ref[...],
                  preferred_element_type=jnp.float32) + b4_ref[...]
    o_ref[...] = out.astype(o_ref.dtype)   # lane-dense [tb, 128] store


def _pad_to(a, rows, cols):
    pr, pc = rows - a.shape[0], cols - a.shape[1]
    if pr == 0 and pc == 0:
        return a
    return jnp.pad(a, ((0, pr), (0, pc)))


@functools.partial(jax.jit,
                   static_argnames=("batch_tile", "compute_dtype", "out_dtype"))
def probe_model_forward(x, params, *, batch_tile=512,
                        compute_dtype=jnp.bfloat16, out_dtype=jnp.float32):
    """x: [B, D] float32.  params: weights w{i} [in,out] (transposed vs. PyTorch's
    [out,in]) and biases b{i} [1,out].  Returns [B, 6] float32."""
    B, D = x.shape
    h1, h2, h3 = HIDDEN

    # --- batch tiling: no wrapper pad; Pallas masks the ragged last block ----
    if B <= batch_tile:
        tb = B                       # single block == full array dims (always legal)
        num_blocks = 1
    else:
        tb = batch_tile              # multiple of 256: fills v6e/v7x MXU M-dim
        num_blocks = pl.cdiv(B, tb)  # ragged tail handled by Pallas masking

    # --- lane-pad narrow layers to 128 (exact: padded channels stay zero) ----
    w1 = params["w1"].astype(compute_dtype)                       # [D, 256]
    w2 = params["w2"].astype(compute_dtype)                       # [256, 128]
    w3 = _pad_to(params["w3"], h2, LANE).astype(compute_dtype)    # [128, 128]
    w4 = _pad_to(params["w4"], LANE, LANE).astype(compute_dtype)  # [128, 128]
    b1 = params["b1"].astype(jnp.float32)                         # [1, 256]
    b2 = params["b2"].astype(jnp.float32)                         # [1, 128]
    b3 = _pad_to(params["b3"], 1, LANE).astype(jnp.float32)       # [1, 128]
    b4 = _pad_to(params["b4"], 1, LANE).astype(jnp.float32)       # [1, 128]

    def resident(a):  # constant index_map: DMA'd once, reused across all grid steps
        nd = a.ndim
        return pl.BlockSpec(a.shape, lambda i, _nd=nd: (0,) * _nd)

    flops = 2 * B * (D * h1 + h1 * h2 + h2 * h3 + h3 * OUT_DIM)
    bytes_accessed = (
        x.size * x.dtype.itemsize
        + B * LANE * jnp.dtype(out_dtype).itemsize
        + sum(a.size * a.dtype.itemsize
              for a in (w1, w2, w3, w4, b1, b2, b3, b4)))

    out_padded = pl.pallas_call(
        mlp_kernel,
        out_shape=jax.ShapeDtypeStruct((B, LANE), out_dtype),
        grid=(num_blocks,),
        in_specs=[
            pl.BlockSpec((tb, D), lambda i: (i, 0)),   # x streamed along batch (f32)
            resident(w1), resident(b1),
            resident(w2), resident(b2),
            resident(w3), resident(b3),
            resident(w4), resident(b4),
        ],
        out_specs=pl.BlockSpec((tb, LANE), lambda i: (i, 0)),  # lane-dense output
        compiler_params=pltpu.CompilerParams(
            dimension_semantics=("parallel",)),        # megacore / v7x 2-TC split
        cost_estimate=pl.CostEstimate(
            flops=flops, transcendentals=0, bytes_accessed=bytes_accessed),
    )(x, w1, b1, w2, b2, w3, b3, w4, b4)

    return out_padded[:, :OUT_DIM].astype(jnp.float32)


def init_params(key, input_dim):
    """Deterministic init mimicking nn.Linear's uniform(-1/sqrt(fan_in), 1/sqrt(fan_in))."""
    dims = [(input_dim, 256), (256, 128), (128, 64), (64, 6)]
    params = {}
    for idx, (fan_in, fan_out) in enumerate(dims, start=1):
        key, kw, kb = jax.random.split(key, 3)
        bound = 1.0 / jnp.sqrt(jnp.float32(fan_in))
        params[f"w{idx}"] = jax.random.uniform(
            kw, (fan_in, fan_out), jnp.float32, -bound, bound)
        params[f"b{idx}"] = jax.random.uniform(
            kb, (1, fan_out), jnp.float32, -bound, bound)
    return params


def reference_forward(x, p):
    h = jnp.maximum(x @ p["w1"] + p["b1"], 0.0)
    h = jnp.maximum(h @ p["w2"] + p["b2"], 0.0)
    h = jnp.maximum(h @ p["w3"] + p["b3"], 0.0)
    return h @ p["w4"] + p["b4"]


if __name__ == "__main__":
    key = jax.random.PRNGKey(0)
    key, kx = jax.random.split(key)

    batch, input_dim = 8, 32
    x = jax.random.normal(kx, (batch, input_dim), jnp.float32)
    params = init_params(key, input_dim)

    ref = reference_forward(x, params)

    # Exact-precision path (f32 matmul operands) for validation.
    out_f32 = jax.block_until_ready(
        probe_model_forward(x, params, compute_dtype=jnp.float32))
    assert out_f32.shape == (batch, 6), out_f32.shape
    assert jnp.allclose(out_f32, ref, atol=1e-4, rtol=1e-4), "f32 mismatch vs reference"

    # Default fast path: bf16 matmul operands (cast in-kernel), f32 accumulation.
    out = jax.block_until_ready(probe_model_forward(x, params))
    assert out.shape == (batch, 6), out.shape
    assert jnp.allclose(out, ref, atol=5e-2, rtol=5e-2), "bf16 mismatch vs reference"

    # Ragged multi-block path: B > batch_tile and not a multiple of the tile
    # (exercises the no-pad masking of the last grid block).
    key, kxb = jax.random.split(key)
    xb = jax.random.normal(kxb, (600, input_dim), jnp.float32)
    refb = reference_forward(xb, params)
    outb = jax.block_until_ready(
        probe_model_forward(xb, params, batch_tile=512, compute_dtype=jnp.float32))
    assert outb.shape == (600, 6), outb.shape
    assert jnp.allclose(outb, refb, atol=1e-4, rtol=1e-4), "ragged-batch mismatch"

    print("KERNEL_OK")
</pallas_src>

<mosaic_0001>
module attributes {stable_mosaic.version = 11 : i64} {
  func.func @mlp_kernel(%arg0: i32, %arg1: memref<8x32xf32, #tpu.memory_space<vmem>>, %arg2: memref<32x256xf32, #tpu.memory_space<vmem>>, %arg3: memref<1x256xf32, #tpu.memory_space<vmem>>, %arg4: memref<256x128xf32, #tpu.memory_space<vmem>>, %arg5: memref<1x128xf32, #tpu.memory_space<vmem>>, %arg6: memref<128x128xf32, #tpu.memory_space<vmem>>, %arg7: memref<1x128xf32, #tpu.memory_space<vmem>>, %arg8: memref<128x128xf32, #tpu.memory_space<vmem>>, %arg9: memref<1x128xf32, #tpu.memory_space<vmem>>, %arg10: memref<8x128xf32, #tpu.memory_space<vmem>>) attributes {dimension_semantics = [#tpu.dimension_semantics<parallel>], iteration_bounds = array<i64: 1>, scalar_prefetch = 0 : i64, scratch_operands = 0 : i64, tpu.core_type = #tpu.core_type<tc>, window_params = [{transform_indices = @transform_0, window_bounds = array<i64: 8, 32>}, {pipeline_mode = #tpu.pipeline_mode<synchronous>, transform_indices = @transform_1, window_bounds = array<i64: 32, 256>}, {pipeline_mode = #tpu.pipeline_mode<synchronous>, transform_indices = @transform_2, window_bounds = array<i64: 1, 256>}, {pipeline_mode = #tpu.pipeline_mode<synchronous>, transform_indices = @transform_3, window_bounds = array<i64: 256, 128>}, {pipeline_mode = #tpu.pipeline_mode<synchronous>, transform_indices = @transform_4, window_bounds = array<i64: 1, 128>}, {pipeline_mode = #tpu.pipeline_mode<synchronous>, transform_indices = @transform_5, window_bounds = array<i64: 128, 128>}, {pipeline_mode = #tpu.pipeline_mode<synchronous>, transform_indices = @transform_6, window_bounds = array<i64: 1, 128>}, {pipeline_mode = #tpu.pipeline_mode<synchronous>, transform_indices = @transform_7, window_bounds = array<i64: 128, 128>}, {pipeline_mode = #tpu.pipeline_mode<synchronous>, transform_indices = @transform_8, window_bounds = array<i64: 1, 128>}, {transform_indices = @transform_9, window_bounds = array<i64: 8, 128>}]} {
    %c0 = arith.constant 0 : index
    %c0_0 = arith.constant 0 : index
    %0 = vector.load %arg1[%c0, %c0_0] : memref<8x32xf32, #tpu.memory_space<vmem>>, vector<8x32xf32>
    %c0_1 = arith.constant 0 : index
    %c0_2 = arith.constant 0 : index
    %1 = vector.load %arg2[%c0_1, %c0_2] : memref<32x256xf32, #tpu.memory_space<vmem>>, vector<32x256xf32>
    %cst = arith.constant dense<0.000000e+00> : vector<8x256xf32>
    %2 = tpu.matmul %0, %1, %cst {dimension_numbers = #tpu.dot_dimension_numbers<[1], [0], [0], [1], [0, 0, 1, 1], [], []>} : vector<8x32xf32>, vector<32x256xf32>, vector<8x256xf32> -> vector<8x256xf32>
    %c0_3 = arith.constant 0 : index
    %c0_4 = arith.constant 0 : index
    %3 = vector.load %arg3[%c0_3, %c0_4] : memref<1x256xf32, #tpu.memory_space<vmem>>, vector<1x256xf32>
    %4 = vector.broadcast %3 : vector<1x256xf32> to vector<8x256xf32>
    %5 = arith.addf %2, %4 : vector<8x256xf32>
    %cst_5 = arith.constant 0.000000e+00 : f32
    %6 = vector.broadcast %cst_5 : f32 to vector<8x256xf32>
    %7 = arith.maximumf %5, %6 : vector<8x256xf32>
    %c0_6 = arith.constant 0 : index
    %c0_7 = arith.constant 0 : index
    %8 = vector.load %arg4[%c0_6, %c0_7] : memref<256x128xf32, #tpu.memory_space<vmem>>, vector<256x128xf32>
    %cst_8 = arith.constant dense<0.000000e+00> : vector<8x128xf32>
    %9 = tpu.matmul %7, %8, %cst_8 {dimension_numbers = #tpu.dot_dimension_numbers<[1], [0], [0], [1], [0, 0, 1, 1], [], []>} : vector<8x256xf32>, vector<256x128xf32>, vector<8x128xf32> -> vector<8x128xf32>
    %c0_9 = arith.constant 0 : index
    %c0_10 = arith.constant 0 : index
    %10 = vector.load %arg5[%c0_9, %c0_10] : memref<1x128xf32, #tpu.memory_space<vmem>>, vector<1x128xf32>
    %11 = vector.broadcast %10 : vector<1x128xf32> to vector<8x128xf32>
    %12 = arith.addf %9, %11 : vector<8x128xf32>
    %cst_11 = arith.constant 0.000000e+00 : f32
    %13 = vector.broadcast %cst_11 : f32 to vector<8x128xf32>
    %14 = arith.maximumf %12, %13 : vector<8x128xf32>
    %c0_12 = arith.constant 0 : index
    %c0_13 = arith.constant 0 : index
    %15 = vector.load %arg6[%c0_12, %c0_13] : memref<128x128xf32, #tpu.memory_space<vmem>>, vector<128x128xf32>
    %cst_14 = arith.constant dense<0.000000e+00> : vector<8x128xf32>
    %16 = tpu.matmul %14, %15, %cst_14 {dimension_numbers = #tpu.dot_dimension_numbers<[1], [0], [0], [1], [0, 0, 1, 1], [], []>} : vector<8x128xf32>, vector<128x128xf32>, vector<8x128xf32> -> vector<8x128xf32>
    %c0_15 = arith.constant 0 : index
    %c0_16 = arith.constant 0 : index
    %17 = vector.load %arg7[%c0_15, %c0_16] : memref<1x128xf32, #tpu.memory_space<vmem>>, vector<1x128xf32>
    %18 = vector.broadcast %17 : vector<1x128xf32> to vector<8x128xf32>
    %19 = arith.addf %16, %18 : vector<8x128xf32>
    %cst_17 = arith.constant 0.000000e+00 : f32
    %20 = vector.broadcast %cst_17 : f32 to vector<8x128xf32>
    %21 = arith.maximumf %19, %20 : vector<8x128xf32>
    %c0_18 = arith.constant 0 : index
    %c0_19 = arith.constant 0 : index
    %22 = vector.load %arg8[%c0_18, %c0_19] : memref<128x128xf32, #tpu.memory_space<vmem>>, vector<128x128xf32>
    %cst_20 = arith.constant dense<0.000000e+00> : vector<8x128xf32>
    %23 = tpu.matmul %21, %22, %cst_20 {dimension_numbers = #tpu.dot_dimension_numbers<[1], [0], [0], [1], [0, 0, 1, 1], [], []>} : vector<8x128xf32>, vector<128x128xf32>, vector<8x128xf32> -> vector<8x128xf32>
    %c0_21 = arith.constant 0 : index
    %c0_22 = arith.constant 0 : index
    %24 = vector.load %arg9[%c0_21, %c0_22] : memref<1x128xf32, #tpu.memory_space<vmem>>, vector<1x128xf32>
    %25 = vector.broadcast %24 : vector<1x128xf32> to vector<8x128xf32>
    %26 = arith.addf %23, %25 : vector<8x128xf32>
    %c0_23 = arith.constant 0 : index
    %c0_24 = arith.constant 0 : index
    %27 = vector.load %arg10[%c0_23, %c0_24] : memref<8x128xf32, #tpu.memory_space<vmem>>, vector<8x128xf32>
    tpu.vector_store %arg10[%c0_23, %c0_24], %26 {strides = array<i32>} : memref<8x128xf32, #tpu.memory_space<vmem>>, vector<8x128xf32>,
    return
  }
  func.func @transform_0(%arg0: i32) -> (i32, i32) {
    %c0_i32 = arith.constant 0 : i32
    %c0_i32_0 = arith.constant 0 : i32
    return %arg0, %c0_i32 : i32, i32
  }
  func.func @transform_1(%arg0: i32) -> (i32, i32) {
    %c0_i32 = arith.constant 0 : i32
    %c0_i32_0 = arith.constant 0 : i32
    %c0_i32_1 = arith.constant 0 : i32
    return %c0_i32, %c0_i32_0 : i32, i32
  }
  func.func @transform_2(%arg0: i32) -> (i32, i32) {
    %c0_i32 = arith.constant 0 : i32
    %c0_i32_0 = arith.constant 0 : i32
    %c0_i32_1 = arith.constant 0 : i32
    return %c0_i32, %c0_i32_0 : i32, i32
  }
  func.func @transform_3(%arg0: i32) -> (i32, i32) {
    %c0_i32 = arith.constant 0 : i32
    %c0_i32_0 = arith.constant 0 : i32
    %c0_i32_1 = arith.constant 0 : i32
    return %c0_i32, %c0_i32_0 : i32, i32
  }
  func.func @transform_4(%arg0: i32) -> (i32, i32) {
    %c0_i32 = arith.constant 0 : i32
    %c0_i32_0 = arith.constant 0 : i32
    %c0_i32_1 = arith.constant 0 : i32
    return %c0_i32, %c0_i32_0 : i32, i32
  }
  func.func @transform_5(%arg0: i32) -> (i32, i32) {
    %c0_i32 = arith.constant 0 : i32
    %c0_i32_0 = arith.constant 0 : i32
    %c0_i32_1 = arith.constant 0 : i32
    return %c0_i32, %c0_i32_0 : i32, i32
  }
  func.func @transform_6(%arg0: i32) -> (i32, i32) {
    %c0_i32 = arith.constant 0 : i32
    %c0_i32_0 = arith.constant 0 : i32
    %c0_i32_1 = arith.constant 0 : i32
    return %c0_i32, %c0_i32_0 : i32, i32
  }
  func.func @transform_7(%arg0: i32) -> (i32, i32) {
    %c0_i32 = arith.constant 0 : i32
    %c0_i32_0 = arith.constant 0 : i32
    %c0_i32_1 = arith.constant 0 : i32
    return %c0_i32, %c0_i32_0 : i32, i32
  }
  func.func @transform_8(%arg0: i32) -> (i32, i32) {
    %c0_i32 = arith.constant 0 : i32
    %c0_i32_0 = arith.constant 0 : i32
    %c0_i32_1 = arith.constant 0 : i32
    return %c0_i32, %c0_i32_0 : i32, i32
  }
  func.func @transform_9(%arg0: i32) -> (i32, i32) {
    %c0_i32 = arith.constant 0 : i32
    %c0_i32_0 = arith.constant 0 : i32
    return %arg0, %c0_i32 : i32, i32
  }
}

</mosaic_0001>

<llo_original>
// kernel: probe_model_forward.1
$region0: #{probe_model_forward.1}
  #allocation0 [shape = 'u32[]', space=smem, size = 0x4, offset = 0x4, fixed_abs, tag = 'smem constant byte address 0x4 - core index']
  #allocation1 [shape = 'u32[144,128]{1,0:T(1,128)}', space=vmem, size = 0x12000, scoped, tag = 'internal scratch']
  %s0 = inlined_call_operand.vmem [shape: f32[8,32], index: 0, kind: input, shape index: {}]
  %s1 = inlined_call_operand.vmem [shape: f32[32,256], index: 1, kind: input, shape index: {}]
  %s2 = inlined_call_operand.vmem [shape: f32[1,256], index: 2, kind: input, shape index: {}]
  %s3 = inlined_call_operand.vmem [shape: f32[256,128], index: 3, kind: input, shape index: {}]
  %s4 = inlined_call_operand.vmem [shape: f32[1,128], index: 4, kind: input, shape index: {}]
  %s5 = inlined_call_operand.vmem [shape: f32[128,128], index: 5, kind: input, shape index: {}]
  %s6 = inlined_call_operand.vmem [shape: f32[1,128], index: 6, kind: input, shape index: {}]
  %s7 = inlined_call_operand.vmem [shape: f32[128,128], index: 7, kind: input, shape index: {}]
  %s8 = inlined_call_operand.vmem [shape: f32[1,128], index: 8, kind: input, shape index: {}]
  %s9 = inlined_call_operand.hbm [shape: f32[8,128], index: 9, kind: output, shape index: {}]
  %s10 = sld [smem:[#allocation0]]
  $region46: #{probe_model_forward.1} parent=0
    _
  %s12 = ssub.s32 1, %s10
  %s13 = scalar_select 0, %s12, %s10
  $region1: #{probe_model_forward.1} parent=0
    #allocation2 [shape = 'u8[4096]{0}', space=vmem, size = 0x1000, scoped, tag = 'output window, operand 0, single buffered']
    #allocation3 [shape = 's32[1]{0}', space=sflag, size = 0x4, scoped, tag = 'scoped memory for probe_model_forward.1']
    %14 = vsyncpa [#allocation3], 0
    // Predicated region
    $region2: #{probe_model_forward.1} parent=1 // pred_check
      _
    $region3: #{probe_model_forward.1} parent=1 // pred_check_branch
      %16 = sbr.rel (0) target = $region5
    $region4: #{probe_model_forward.1} parent=1 // pred_region
      _
    $region5: #{probe_model_forward.1} parent=1 // pred_fallthru
      _
    // Predicated region
    $region6: #{probe_model_forward.1} parent=1 // pred_check
      _
    $region7: #{probe_model_forward.1} parent=1 // pred_check_branch
      %18 = sbr.rel (0) target = $region9
    $region8: #{probe_model_forward.1} parent=1 // pred_region
      _
    $region9: #{probe_model_forward.1} parent=1 // pred_fallthru
      _
    // Predicated region
    $region10: #{probe_model_forward.1} parent=1 // pred_check
      _
    $region11: #{probe_model_forward.1} parent=1 // pred_check_branch
      %20 = sbr.rel (0) target = $region13
    $region12: #{probe_model_forward.1} parent=1 // pred_region
      _
    $region13: #{probe_model_forward.1} parent=1 // pred_fallthru
      _
    // Predicated region
    $region14: #{probe_model_forward.1} parent=1 // pred_check
      _
    $region15: #{probe_model_forward.1} parent=1 // pred_check_branch
      %22 = sbr.rel (0) target = $region17
    $region16: #{probe_model_forward.1} parent=1 // pred_region
      _
    $region17: #{probe_model_forward.1} parent=1 // pred_fallthru
      _
    // Predicated region
    $region18: #{probe_model_forward.1} parent=1 // pred_check
      _
    $region19: #{probe_model_forward.1} parent=1 // pred_check_branch
      %24 = sbr.rel (0) target = $region21
    $region20: #{probe_model_forward.1} parent=1 // pred_region
      _
    $region21: #{probe_model_forward.1} parent=1 // pred_fallthru
      _
    // Predicated region
    $region22: #{probe_model_forward.1} parent=1 // pred_check
      _
    $region23: #{probe_model_forward.1} parent=1 // pred_check_branch
      %26 = sbr.rel (0) target = $region25
    $region24: #{probe_model_forward.1} parent=1 // pred_region
      _
    $region25: #{probe_model_forward.1} parent=1 // pred_fallthru
      _
    // Predicated region
    $region26: #{probe_model_forward.1} parent=1 // pred_check
      _
    $region27: #{probe_model_forward.1} parent=1 // pred_check_branch
      %28 = sbr.rel (0) target = $region29
    $region28: #{probe_model_forward.1} parent=1 // pred_region
      _
    $region29: #{probe_model_forward.1} parent=1 // pred_fallthru
      _
    // Predicated region
    $region30: #{probe_model_forward.1} parent=1 // pred_check
      _
    $region31: #{probe_model_forward.1} parent=1 // pred_check_branch
      %30 = sbr.rel (0) target = $region33
    $region32: #{probe_model_forward.1} parent=1 // pred_region
      _
    $region33: #{probe_model_forward.1} parent=1 // pred_fallthru
      _
    // Predicated region
    $region34: #{probe_model_forward.1} parent=1 // pred_check
      _
    $region35: #{probe_model_forward.1} parent=1 // pred_check_branch
      %32 = sbr.rel (0) target = $region37
    $region36: #{probe_model_forward.1} parent=1 // pred_region
      _
    $region37: #{probe_model_forward.1} parent=1 // pred_fallthru
      _
    %v33 = vld [vmem:[%s0] sm:$0xff]
    %v34 = vld [vmem:[%s1] sm:$0xff]
    %v35 = vld [vmem:[%s1 + $0x8] sm:$0xff]
    %v36 = vld [vmem:[%s1 + $0x10] sm:$0xff]
    %v37 = vld [vmem:[%s1 + $0x18] sm:$0xff]
    %v38 = vld [vmem:[%s1 + $0x20] sm:$0xff]
    %v39 = vld [vmem:[%s1 + $0x28] sm:$0xff]
    %v40 = vld [vmem:[%s1 + $0x30] sm:$0xff]
    %v41 = vld [vmem:[%s1 + $0x38] sm:$0xff]
    %v42 = vld [vmem:[%s2] sm:$0x3]
    %v44 = vlaneseq
    %v45 = vshrl.u32 %v44, 7
    %v46 = vsub.s32 0, %v45
    %v47 = vrot.slane %v42, %v46
    %v48 = vlaneseq
    %v49 = vshrl.u32 %v48, 7
    %v50 = vsub.s32 1, %v49
    %v51 = vrot.slane %v42, %v50
    %vm54 = vcmask 261120
    %v56 = vsel %vm54, %v33, 0
    %58 = vmatprep.subr.mxu0 0.0
    %59 = vmatpush1.msra.mxu0 0.0
    %60 = vmatprep.subr.mxu0 0.0
    %61 = vmatpush1.msra.mxu0 0.0
    %62 = vmatprep.subr.mxu0 0.0
    %63 = vmatpush1.msra.mxu0 0.0
    %64 = vmatprep.subr.mxu0 0.0
    %65 = vmatpush1.msra.mxu0 0.0
    %66 = vmatprep.subr.mxu0 0.0
    %67 = vmatpush1.msra.mxu0 0.0
    %68 = vmatprep.subr.mxu0 0.0
    %69 = vmatpush1.msra.mxu0 0.0
    %70 = vmatprep.subr.mxu0 0.0
    %71 = vmatpush1.msra.mxu0 0.0
    %72 = vmatprep.subr.mxu0 0.0
    %73 = vmatpush1.msra.mxu0 0.0
    %74 = vmatprep.subr.mxu0 0.0
    %75 = vmatpush1.msra.mxu0 0.0
    %76 = vmatprep.subr.mxu0 0.0
    %77 = vmatpush1.msra.mxu0 0.0
    %78 = vmatprep.subr.mxu0 0.0
    %79 = vmatpush1.msra.mxu0 0.0
    %80 = vmatprep.subr.mxu0 0.0
    %81 = vmatpush1.msra.mxu0 0.0
    %82 = vmatprep.subr.mxu0 %v41
    %83 = vmatpush1.msra.mxu0 %v40
    %84 = vmatprep.subr.mxu0 %v39
    %85 = vmatpush1.msra.mxu0 %v38
    %86 = vmatprep.subr.mxu0 %v37
    %87 = vmatpush1.msra.mxu0 %v36
    %88 = vmatprep.subr.mxu0 %v35
    %89 = vmatpush1.msra.mxu0 %v34
    %90 = vmatprep.subr.mxu0 0.0
    %91 = vmatpush2.msra.mxu0 0.0
    %92 = vmatprep.subr.mxu0 0.0
    %93 = vmatpush2.msra.mxu0 0.0
    %94 = vmatprep.subr.mxu0 0.0
    %95 = vmatpush2.msra.mxu0 0.0
    %96 = vmatprep.subr.mxu0 0.0
    %97 = vmatpush2.msra.mxu0 0.0
    %98 = vmatprep.subr.mxu0 0.0
    %99 = vmatpush2.msra.mxu0 0.0
    %100 = vmatprep.subr.mxu0 0.0
    %101 = vmatpush2.msra.mxu0 0.0
    %102 = vmatprep.subr.mxu0 0.0
    %103 = vmatpush2.msra.mxu0 0.0
    %104 = vmatprep.subr.mxu0 0.0
    %105 = vmatpush2.msra.mxu0 0.0
    %106 = vmatprep.subr.mxu0 0.0
    %107 = vmatpush2.msra.mxu0 0.0
    %108 = vmatprep.subr.mxu0 0.0
    %109 = vmatpush2.msra.mxu0 0.0
    %110 = vmatprep.subr.mxu0 0.0
    %111 = vmatpush2.msra.mxu0 0.0
    %112 = vmatprep.subr.mxu0 0.0
    %113 = vmatpush2.msra.mxu0 0.0
    %114 = vmatprep.subr.mxu0 0.0
    %115 = vmatpush2.msra.mxu0 0.0
    %116 = vmatprep.subr.mxu0 0.0
    %117 = vmatpush2.msra.mxu0 0.0
    %118 = vmatprep.subr.mxu0 0.0
    %119 = vmatpush2.msra.mxu0 0.0
    %120 = vmatprep.subr.mxu0 0.0
    %121 = vmatpush2.msra.mxu0 0.0
    %122 = vmatprep.mubr.f32.mxu0 0.0
    %123 = vmatmul.mubr.f32.gmra.mxu0 %v56
    %v124 = vpop.f32.mrf.mxu0
    %v125 = vadd.f32 %v47, %v124
    %v126 = vpop.f32.mrf.mxu0
    %v127 = vadd.f32 %v51, %v126
    %128 = vdwg.mxu0
    %v129 = vmax.f32 %v125, 0.0
    %v130 = vmax.f32 %v127, 0.0
    %v131 = vld [vmem:[%s3] sm:$0xff]
    %v132 = vld [vmem:[%s3 + $0x8] sm:$0xff]
    %v133 = vld [vmem:[%s3 + $0x10] sm:$0xff]
    %v134 = vld [vmem:[%s3 + $0x18] sm:$0xff]
    %v135 = vld [vmem:[%s3 + $0x20] sm:$0xff]
    %v136 = vld [vmem:[%s3 + $0x28] sm:$0xff]
    %v137 = vld [vmem:[%s3 + $0x30] sm:$0xff]
    %v138 = vld [vmem:[%s3 + $0x38] sm:$0xff]
    %v139 = vld [vmem:[%s3 + $0x40] sm:$0xff]
    %v140 = vld [vmem:[%s3 + $0x48] sm:$0xff]
    %v141 = vld [vmem:[%s3 + $0x50] sm:$0xff]
    %v142 = vld [vmem:[%s3 + $0x58] sm:$0xff]
    %v143 = vld [vmem:[%s3 + $0x60] sm:$0xff]
    %v144 = vld [vmem:[%s3 + $0x68] sm:$0xff]
    %v145 = vld [vmem:[%s3 + $0x70] sm:$0xff]
    %v146 = vld [vmem:[%s3 + $0x78] sm:$0xff]
    %v147 = vld [vmem:[%s3 + $0x80] sm:$0xff]
    %v148 = vld [vmem:[%s3 + $0x88] sm:$0xff]
    %v149 = vld [vmem:[%s3 + $0x90] sm:$0xff]
    %v150 = vld [vmem:[%s3 + $0x98] sm:$0xff]
    %v151 = vld [vmem:[%s3 + $0xa0] sm:$0xff]
    %v152 = vld [vmem:[%s3 + $0xa8] sm:$0xff]
    %v153 = vld [vmem:[%s3 + $0xb0] sm:$0xff]
    %v154 = vld [vmem:[%s3 + $0xb8] sm:$0xff]
    %v155 = vld [vmem:[%s3 + $0xc0] sm:$0xff]
    %v156 = vld [vmem:[%s3 + $0xc8] sm:$0xff]
    %v157 = vld [vmem:[%s3 + $0xd0] sm:$0xff]
    %v158 = vld [vmem:[%s3 + $0xd8] sm:$0xff]
    %v159 = vld [vmem:[%s3 + $0xe0] sm:$0xff]
    %v160 = vld [vmem:[%s3 + $0xe8] sm:$0xff]
    %v161 = vld [vmem:[%s3 + $0xf0] sm:$0xff]
    %v162 = vld [vmem:[%s3 + $0xf8] sm:$0xff]
    %v163 = vld [vmem:[%s4] sm:$0x1]
    %v165 = vlaneseq
    %v166 = vshrl.u32 %v165, 7
    %v167 = vsub.s32 0, %v166
    %v168 = vrot.slane %v163, %v167
    %170 = vmatprep.subr.mxu0 0.0
    %171 = vmatpush1.msra.mxu0 %v146
    %172 = vmatprep.subr.mxu0 0.0
    %173 = vmatpush1.msra.mxu0 %v145
    %174 = vmatprep.subr.mxu0 0.0
    %175 = vmatpush1.msra.mxu0 %v144
    %176 = vmatprep.subr.mxu0 0.0
    %177 = vmatpush1.msra.mxu0 %v143
    %178 = vmatprep.subr.mxu0 0.0
    %179 = vmatpush1.msra.mxu0 %v142
    %180 = vmatprep.subr.mxu0 0.0
    %181 = vmatpush1.msra.mxu0 %v141
    %182 = vmatprep.subr.mxu0 0.0
    %183 = vmatpush1.msra.mxu0 %v140
    %184 = vmatprep.subr.mxu0 0.0
    %185 = vmatpush1.msra.mxu0 %v139
    %186 = vmatprep.subr.mxu0 0.0
    %187 = vmatpush1.msra.mxu0 %v138
    %188 = vmatprep.subr.mxu0 0.0
    %189 = vmatpush1.msra.mxu0 %v137
    %190 = vmatprep.subr.mxu0 0.0
    %191 = vmatpush1.msra.mxu0 %v136
    %192 = vmatprep.subr.mxu0 0.0
    %193 = vmatpush1.msra.mxu0 %v135
    %194 = vmatprep.subr.mxu0 0.0
    %195 = vmatpush1.msra.mxu0 %v134
    %196 = vmatprep.subr.mxu0 0.0
    %197 = vmatpush1.msra.mxu0 %v133
    %198 = vmatprep.subr.mxu0 0.0
    %199 = vmatpush1.msra.mxu0 %v132
    %200 = vmatprep.subr.mxu0 0.0
    %201 = vmatpush1.msra.mxu0 %v131
    %202 = vmatprep.subr.mxu0 0.0
    %203 = vmatpush2.msra.mxu0 %v162
    %204 = vmatprep.subr.mxu0 0.0
    %205 = vmatpush2.msra.mxu0 %v161
    %206 = vmatprep.subr.mxu0 0.0
    %207 = vmatpush2.msra.mxu0 %v160
    %208 = vmatprep.subr.mxu0 0.0
    %209 = vmatpush2.msra.mxu0 %v159
    %210 = vmatprep.subr.mxu0 0.0
    %211 = vmatpush2.msra.mxu0 %v158
    %212 = vmatprep.subr.mxu0 0.0
    %213 = vmatpush2.msra.mxu0 %v157
    %214 = vmatprep.subr.mxu0 0.0
    %215 = vmatpush2.msra.mxu0 %v156
    %216 = vmatprep.subr.mxu0 0.0
    %217 = vmatpush2.msra.mxu0 %v155
    %218 = vmatprep.subr.mxu0 0.0
    %219 = vmatpush2.msra.mxu0 %v154
    %220 = vmatprep.subr.mxu0 0.0
    %221 = vmatpush2.msra.mxu0 %v153
    %222 = vmatprep.subr.mxu0 0.0
    %223 = vmatpush2.msra.mxu0 %v152
    %224 = vmatprep.subr.mxu0 0.0
    %225 = vmatpush2.msra.mxu0 %v151
    %226 = vmatprep.subr.mxu0 0.0
    %227 = vmatpush2.msra.mxu0 %v150
    %228 = vmatprep.subr.mxu0 0.0
    %229 = vmatpush2.msra.mxu0 %v149
    %230 = vmatprep.subr.mxu0 0.0
    %231 = vmatpush2.msra.mxu0 %v148
    %232 = vmatprep.subr.mxu0 0.0
    %233 = vmatpush2.msra.mxu0 %v147
    %234 = vmatprep.mubr.f32.mxu0 %v130
    %235 = vmatmul.mubr.f32.gmra.mxu0 %v129
    %v236 = vpop.f32.mrf.mxu0
    %v237 = vadd.f32 %v168, %v236
    %v238 = vpop.f32.mrf.mxu0
    %239 = vdwg.mxu0
    %v240 = vmax.f32 %v237, 0.0
    %v241 = vld [vmem:[%s5] sm:$0xff]
    %v242 = vld [vmem:[%s5 + $0x8] sm:$0xff]
    %v243 = vld [vmem:[%s5 + $0x10] sm:$0xff]
    %v244 = vld [vmem:[%s5 + $0x18] sm:$0xff]
    %v245 = vld [vmem:[%s5 + $0x20] sm:$0xff]
    %v246 = vld [vmem:[%s5 + $0x28] sm:$0xff]
    %v247 = vld [vmem:[%s5 + $0x30] sm:$0xff]
    %v248 = vld [vmem:[%s5 + $0x38] sm:$0xff]
    %v249 = vld [vmem:[%s5 + $0x40] sm:$0xff]
    %v250 = vld [vmem:[%s5 + $0x48] sm:$0xff]
    %v251 = vld [vmem:[%s5 + $0x50] sm:$0xff]
    %v252 = vld [vmem:[%s5 + $0x58] sm:$0xff]
    %v253 = vld [vmem:[%s5 + $0x60] sm:$0xff]
    %v254 = vld [vmem:[%s5 + $0x68] sm:$0xff]
    %v255 = vld [vmem:[%s5 + $0x70] sm:$0xff]
    %v256 = vld [vmem:[%s5 + $0x78] sm:$0xff]
    %v257 = vld [vmem:[%s6] sm:$0x1]
    %v259 = vlaneseq
    %v260 = vshrl.u32 %v259, 7
    %v261 = vsub.s32 0, %v260
    %v262 = vrot.slane %v257, %v261
    %264 = vmatprep.subr.mxu0 0.0
    %265 = vmatpush1.msra.mxu0 %v256
    %266 = vmatprep.subr.mxu0 0.0
    %267 = vmatpush1.msra.mxu0 %v255
    %268 = vmatprep.subr.mxu0 0.0
    %269 = vmatpush1.msra.mxu0 %v254
    %270 = vmatprep.subr.mxu0 0.0
    %271 = vmatpush1.msra.mxu0 %v253
    %272 = vmatprep.subr.mxu0 0.0
    %273 = vmatpush1.msra.mxu0 %v252
    %274 = vmatprep.subr.mxu0 0.0
    %275 = vmatpush1.msra.mxu0 %v251
    %276 = vmatprep.subr.mxu0 0.0
    %277 = vmatpush1.msra.mxu0 %v250
    %278 = vmatprep.subr.mxu0 0.0
    %279 = vmatpush1.msra.mxu0 %v249
    %280 = vmatprep.subr.mxu0 0.0
    %281 = vmatpush1.msra.mxu0 %v248
    %282 = vmatprep.subr.mxu0 0.0
    %283 = vmatpush1.msra.mxu0 %v247
    %284 = vmatprep.subr.mxu0 0.0
    %285 = vmatpush1.msra.mxu0 %v246
    %286 = vmatprep.subr.mxu0 0.0
    %287 = vmatpush1.msra.mxu0 %v245
    %288 = vmatprep.subr.mxu0 0.0
    %289 = vmatpush1.msra.mxu0 %v244
    %290 = vmatprep.subr.mxu0 0.0
    %291 = vmatpush1.msra.mxu0 %v243
    %292 = vmatprep.subr.mxu0 0.0
    %293 = vmatpush1.msra.mxu0 %v242
    %294 = vmatprep.subr.mxu0 0.0
    %295 = vmatpush1.msra.mxu0 %v241
    %296 = vmatprep.subr.mxu0 0.0
    %297 = vmatpush2.msra.mxu0 0.0
    %298 = vmatprep.subr.mxu0 0.0
    %299 = vmatpush2.msra.mxu0 0.0
    %300 = vmatprep.subr.mxu0 0.0
    %301 = vmatpush2.msra.mxu0 0.0
    %302 = vmatprep.subr.mxu0 0.0
    %303 = vmatpush2.msra.mxu0 0.0
    %304 = vmatprep.subr.mxu0 0.0
    %305 = vmatpush2.msra.mxu0 0.0
    %306 = vmatprep.subr.mxu0 0.0
    %307 = vmatpush2.msra.mxu0 0.0
    %308 = vmatprep.subr.mxu0 0.0
    %309 = vmatpush2.msra.mxu0 0.0
    %310 = vmatprep.subr.mxu0 0.0
    %311 = vmatpush2.msra.mxu0 0.0
    %312 = vmatprep.subr.mxu0 0.0
    %313 = vmatpush2.msra.mxu0 0.0
    %314 = vmatprep.subr.mxu0 0.0
    %315 = vmatpush2.msra.mxu0 0.0
    %316 = vmatprep.subr.mxu0 0.0
    %317 = vmatpush2.msra.mxu0 0.0
    %318 = vmatprep.subr.mxu0 0.0
    %319 = vmatpush2.msra.mxu0 0.0
    %320 = vmatprep.subr.mxu0 0.0
    %321 = vmatpush2.msra.mxu0 0.0
    %322 = vmatprep.subr.mxu0 0.0
    %323 = vmatpush2.msra.mxu0 0.0
    %324 = vmatprep.subr.mxu0 0.0
    %325 = vmatpush2.msra.mxu0 0.0
    %326 = vmatprep.subr.mxu0 0.0
    %327 = vmatpush2.msra.mxu0 0.0
    %328 = vmatprep.mubr.f32.mxu0 0.0
    %329 = vmatmul.mubr.f32.gmra.mxu0 %v240
    %v330 = vpop.f32.mrf.mxu0
    %v331 = vadd.f32 %v262, %v330
    %v332 = vpop.f32.mrf.mxu0
    %333 = vdwg.mxu0
    %v334 = vmax.f32 %v331, 0.0
    %v335 = vld [vmem:[%s7] sm:$0xff]
    %v336 = vld [vmem:[%s7 + $0x8] sm:$0xff]
    %v337 = vld [vmem:[%s7 + $0x10] sm:$0xff]
    %v338 = vld [vmem:[%s7 + $0x18] sm:$0xff]
    %v339 = vld [vmem:[%s7 + $0x20] sm:$0xff]
    %v340 = vld [vmem:[%s7 + $0x28] sm:$0xff]
    %v341 = vld [vmem:[%s7 + $0x30] sm:$0xff]
    %v342 = vld [vmem:[%s7 + $0x38] sm:$0xff]
    %v343 = vld [vmem:[%s7 + $0x40] sm:$0xff]
    %v344 = vld [vmem:[%s7 + $0x48] sm:$0xff]
    %v345 = vld [vmem:[%s7 + $0x50] sm:$0xff]
    %v346 = vld [vmem:[%s7 + $0x58] sm:$0xff]
    %v347 = vld [vmem:[%s7 + $0x60] sm:$0xff]
    %v348 = vld [vmem:[%s7 + $0x68] sm:$0xff]
    %v349 = vld [vmem:[%s7 + $0x70] sm:$0xff]
    %v350 = vld [vmem:[%s7 + $0x78] sm:$0xff]
    %v351 = vld [vmem:[%s8] sm:$0x1]
    %v353 = vlaneseq
    %v354 = vshrl.u32 %v353, 7
    %v355 = vsub.s32 0, %v354
    %v356 = vrot.slane %v351, %v355
    %358 = vmatprep.subr.mxu0 0.0
    %359 = vmatpush1.msra.mxu0 %v350
    %360 = vmatprep.subr.mxu0 0.0
    %361 = vmatpush1.msra.mxu0 %v349
    %362 = vmatprep.subr.mxu0 0.0
    %363 = vmatpush1.msra.mxu0 %v348
    %364 = vmatprep.subr.mxu0 0.0
    %365 = vmatpush1.msra.mxu0 %v347
    %366 = vmatprep.subr.mxu0 0.0
    %367 = vmatpush1.msra.mxu0 %v346
    %368 = vmatprep.subr.mxu0 0.0
    %369 = vmatpush1.msra.mxu0 %v345
    %370 = vmatprep.subr.mxu0 0.0
    %371 = vmatpush1.msra.mxu0 %v344
    %372 = vmatprep.subr.mxu0 0.0
    %373 = vmatpush1.msra.mxu0 %v343
    %374 = vmatprep.subr.mxu0 0.0
    %375 = vmatpush1.msra.mxu0 %v342
    %376 = vmatprep.subr.mxu0 0.0
    %377 = vmatpush1.msra.mxu0 %v341
    %378 = vmatprep.subr.mxu0 0.0
    %379 = vmatpush1.msra.mxu0 %v340
    %380 = vmatprep.subr.mxu0 0.0
    %381 = vmatpush1.msra.mxu0 %v339
    %382 = vmatprep.subr.mxu0 0.0
    %383 = vmatpush1.msra.mxu0 %v338
    %384 = vmatprep.subr.mxu0 0.0
    %385 = vmatpush1.msra.mxu0 %v337
    %386 = vmatprep.subr.mxu0 0.0
    %387 = vmatpush1.msra.mxu0 %v336
    %388 = vmatprep.subr.mxu0 0.0
    %389 = vmatpush1.msra.mxu0 %v335
    %390 = vmatprep.subr.mxu0 0.0
    %391 = vmatpush2.msra.mxu0 0.0
    %392 = vmatprep.subr.mxu0 0.0
    %393 = vmatpush2.msra.mxu0 0.0
    %394 = vmatprep.subr.mxu0 0.0
    %395 = vmatpush2.msra.mxu0 0.0
    %396 = vmatprep.subr.mxu0 0.0
    %397 = vmatpush2.msra.mxu0 0.0
    %398 = vmatprep.subr.mxu0 0.0
    %399 = vmatpush2.msra.mxu0 0.0
    %400 = vmatprep.subr.mxu0 0.0
    %401 = vmatpush2.msra.mxu0 0.0
    %402 = vmatprep.subr.mxu0 0.0
    %403 = vmatpush2.msra.mxu0 0.0
    %404 = vmatprep.subr.mxu0 0.0
    %405 = vmatpush2.msra.mxu0 0.0
    %406 = vmatprep.subr.mxu0 0.0
    %407 = vmatpush2.msra.mxu0 0.0
    %408 = vmatprep.subr.mxu0 0.0
    %409 = vmatpush2.msra.mxu0 0.0
    %410 = vmatprep.subr.mxu0 0.0
    %411 = vmatpush2.msra.mxu0 0.0
    %412 = vmatprep.subr.mxu0 0.0
    %413 = vmatpush2.msra.mxu0 0.0
    %414 = vmatprep.subr.mxu0 0.0
    %415 = vmatpush2.msra.mxu0 0.0
    %416 = vmatprep.subr.mxu0 0.0
    %417 = vmatpush2.msra.mxu0 0.0
    %418 = vmatprep.subr.mxu0 0.0
    %419 = vmatpush2.msra.mxu0 0.0
    %420 = vmatprep.subr.mxu0 0.0
    %421 = vmatpush2.msra.mxu0 0.0
    %422 = vmatprep.mubr.f32.mxu0 0.0
    %423 = vmatmul.mubr.f32.gmra.mxu0 %v334
    %v424 = vpop.f32.mrf.mxu0
    %v425 = vadd.f32 %v356, %v424
    %v426 = vpop.f32.mrf.mxu0
    %427 = vdwg.mxu0
    %428 = vst [vmem:[#allocation2] sm:$0xff] %v425
    // Predicated region
    $region38: #{probe_model_forward.1} parent=1 // pred_check
      _
    $region39: #{probe_model_forward.1} parent=1 // pred_check_branch
      %430 = sbr.rel (0) target = $region41
    $region40: #{probe_model_forward.1} parent=1 // pred_region
      %s432 = ssub.s32 128, 128
      %433 = vsyncadd [#allocation3], %s432
      %s435 = sshll.u32 [#allocation2], 4
      %s436 = int_to_ptr.vmem [resolvable:$true] %s435
      %438 = dma.vmem_to_hbm [thread:$0]  %s436, 128, %s9, [#allocation3]
    $region41: #{probe_model_forward.1} parent=1 // pred_fallthru
      _
    // Predicated region
    $region42: #{probe_model_forward.1} parent=1 // pred_check
      _
    $region43: #{probe_model_forward.1} parent=1 // pred_check_branch
      %440 = sbr.rel (0) target = $region45
    $region44: #{probe_model_forward.1} parent=1 // pred_region
      %441 = dma.done [#allocation3], 128
    $region45: #{probe_model_forward.1} parent=1 // pred_fallthru
      _
    %442 = vsyncpa [#allocation3], 1

</llo_original>
